<compile_context>
chip_gen: v5e
topology: v5e:2x2
jax: 0.10.0
libtpu: 0.0.40
codegen_flags: <defaults>
</compile_context>

<pallas_src>
import jax
import jax.numpy as jnp
from jax.experimental import pallas as pl
from jax.experimental.pallas import tpu as pltpu

# ---------------- problem sizes (small, synthetic) ----------------
N_GRAPHS = 8          # total graphs per pallas_call
GRAPHS_PER_STEP = 4   # Bt: graphs processed per grid step (grid = (2,))
N_NODES = 64          # nodes per graph (multiple of 8 -> sublane aligned)
IN_FEATURES = 32
GNN_FEATURES = 128    # hidden width (lane dense)
OUT_FEATURES = 128    # output width: multiple of 128 -> unmasked stores


def gcn_kernel(x_ref, adj_ref, norm_ref,
               w1_ref, b1_ref, w2_ref, b2_ref,
               out_ref):
    """Fused 2-layer GCN forward for Bt graphs per grid step."""
    Bt, N, _ = adj_ref.shape
    Dh = w1_ref.shape[1]
    Dout = w2_ref.shape[1]

    # Fold the per-destination-node norm into the adjacency once; reused by both
    # layers: norm[d] * sum_s adj[d,s]*h[s] == sum_s (norm[d]*adj[d,s]) * h[s].
    # adj arrives as bf16 (exact 0/1); compute stays f32.
    adj_n = adj_ref[...].astype(jnp.float32) * norm_ref[...]          # [Bt, N, N]

    # ---- layer 1 (i2h): batch-merged fc matmul on the MXU ----
    h = jnp.dot(x_ref[...], w1_ref[...],
                preferred_element_type=jnp.float32) + b1_ref[...]      # [Bt*N, Dh]
    h = h.reshape(Bt, N, Dh)
    h = jnp.einsum('bds,bsf->bdf', adj_n, h,
                   preferred_element_type=jnp.float32)                 # [Bt, N, Dh]

    # TODO(synk): nn.Dropout(0.5) treated as inference-mode identity (no in-kernel RNG mask).
    h = jnp.maximum(h, 0.0)                                            # ReLU

    # ---- layer 2 (h2o): batch-merged fc matmul, then per-graph aggregation ----
    h = jnp.dot(h.reshape(Bt * N, Dh), w2_ref[...],
                preferred_element_type=jnp.float32) + b2_ref[...]      # [Bt*N, Dout]
    h = h.reshape(Bt, N, Dout)
    out_ref[...] = jnp.einsum('bds,bsf->bdf', adj_n, h,
                              preferred_element_type=jnp.float32)      # [Bt, N, Dout]


def gcn_forward(x, adj, norm, params, graphs_per_step=GRAPHS_PER_STEP):
    """x:[B,N,Din], adj:[B,N,N], norm:[B,N,1] -> [B,N,Dout]."""
    w1, b1, w2, b2 = params
    B, N, Din = x.shape
    Dh = w1.shape[1]
    Dout = w2.shape[1]

    Bt = graphs_per_step
    assert B % Bt == 0
    num_steps = B // Bt

    # Flatten node features so the kernel's fc matmuls see Bt*N MXU rows directly.
    x_flat = x.reshape(B * N, Din)
    # 0/1 mask -> bf16 is bit-exact and halves the adjacency DMA stream.
    adj_bf16 = adj.astype(jnp.bfloat16)

    def fixed(r, c):
        return pl.BlockSpec((r, c), lambda b: (0, 0))   # resident across the grid

    return pl.pallas_call(
        gcn_kernel,
        out_shape=jax.ShapeDtypeStruct((B, N, Dout), jnp.float32),
        grid=(num_steps,),
        in_specs=[
            pl.BlockSpec((Bt * N, Din), lambda b: (b, 0)),   # x (flattened)
            pl.BlockSpec((Bt, N, N), lambda b: (b, 0, 0)),   # adj (bf16)
            pl.BlockSpec((Bt, N, 1), lambda b: (b, 0, 0)),   # norm
            fixed(Din, Dh),      # W1 (pre-transposed to [in, out])
            fixed(1, Dh),        # b1
            fixed(Dh, Dout),     # W2 (pre-transposed to [in, out])
            fixed(1, Dout),      # b2
        ],
        out_specs=pl.BlockSpec((Bt, N, Dout), lambda b: (b, 0, 0)),
        compiler_params=pltpu.CompilerParams(
            dimension_semantics=("parallel",)),
    )(x_flat, adj_bf16, norm, w1, b1, w2, b2)


def gcn_reference(x, adj, norm, params):
    """Pure-JAX reference mirroring the PyTorch message-passing semantics."""
    w1, b1, w2, b2 = params
    hp = jnp.einsum('bnd,df->bnf', x, w1,
                    precision=jax.lax.Precision.HIGHEST) + b1
    h = jnp.einsum('bds,bsf->bdf', adj, hp,
                   precision=jax.lax.Precision.HIGHEST) * norm
    h = jnp.maximum(h, 0.0)                       # Dropout (eval) + ReLU
    hp = jnp.einsum('bnd,df->bnf', h, w2,
                    precision=jax.lax.Precision.HIGHEST) + b2
    return jnp.einsum('bds,bsf->bdf', adj, hp,
                      precision=jax.lax.Precision.HIGHEST) * norm


def init_params(key):
    """PyTorch-style uniform(-1/sqrt(fan_in), 1/sqrt(fan_in)) init; weights stored [in, out]."""
    k1, k2, k3, k4 = jax.random.split(key, 4)

    def uni(k, shape, fan_in):
        bound = 1.0 / (fan_in ** 0.5)
        return jax.random.uniform(k, shape, jnp.float32, -bound, bound)

    w1 = uni(k1, (IN_FEATURES, GNN_FEATURES), IN_FEATURES)   # i2h.fc.weight^T
    b1 = uni(k2, (1, GNN_FEATURES), IN_FEATURES)             # i2h.fc.bias
    w2 = uni(k3, (GNN_FEATURES, OUT_FEATURES), GNN_FEATURES) # h2o.fc.weight^T
    b2 = uni(k4, (1, OUT_FEATURES), GNN_FEATURES)            # h2o.fc.bias
    return w1, b1, w2, b2


if __name__ == "__main__":
    key = jax.random.PRNGKey(0)
    kx, kadj, kp = jax.random.split(key, 3)

    # node features for a batch of graphs
    x = jax.random.normal(kx, (N_GRAPHS, N_NODES, IN_FEATURES), jnp.float32)

    # random directed adjacency (adj[b, d, s] = 1 iff edge s->d) + self loops
    adj = (jax.random.uniform(kadj, (N_GRAPHS, N_NODES, N_NODES)) > 0.7).astype(jnp.float32)
    adj = jnp.maximum(adj, jnp.eye(N_NODES, dtype=jnp.float32)[None])

    # per-node GCN normalization (the module takes `norm` as an input)
    deg = jnp.sum(adj, axis=2, keepdims=True)
    norm = 1.0 / jnp.sqrt(jnp.maximum(deg, 1.0))              # [B, N, 1]

    params = init_params(kp)

    out = gcn_forward(x, adj, norm, params)
    out = jax.block_until_ready(out)

    ref = gcn_reference(x, adj, norm, params)
    assert out.shape == (N_GRAPHS, N_NODES, OUT_FEATURES)
    max_diff = float(jnp.max(jnp.abs(out - ref)))
    assert jnp.allclose(out, ref, atol=2e-3, rtol=2e-3), (
        f"Pallas output mismatch vs reference (max abs diff {max_diff})")

    print("KERNEL_OK")
</pallas_src>

<mosaic_0001>
module attributes {stable_mosaic.version = 11 : i64} {
  func.func @gcn_kernel(%arg0: i32, %arg1: memref<256x32xf32, #tpu.memory_space<vmem>>, %arg2: memref<4x64x64xbf16, #tpu.memory_space<vmem>>, %arg3: memref<4x64x1xf32, #tpu.memory_space<vmem>>, %arg4: memref<32x128xf32, #tpu.memory_space<vmem>>, %arg5: memref<1x128xf32, #tpu.memory_space<vmem>>, %arg6: memref<128x128xf32, #tpu.memory_space<vmem>>, %arg7: memref<1x128xf32, #tpu.memory_space<vmem>>, %arg8: memref<4x64x128xf32, #tpu.memory_space<vmem>>) attributes {dimension_semantics = [#tpu.dimension_semantics<parallel>], iteration_bounds = array<i64: 2>, scalar_prefetch = 0 : i64, scratch_operands = 0 : i64, tpu.core_type = #tpu.core_type<tc>, window_params = [{transform_indices = @transform_0, window_bounds = array<i64: 256, 32>}, {transform_indices = @transform_1, window_bounds = array<i64: 4, 64, 64>}, {transform_indices = @transform_2, window_bounds = array<i64: 4, 64, 1>}, {pipeline_mode = #tpu.pipeline_mode<synchronous>, transform_indices = @transform_3, window_bounds = array<i64: 32, 128>}, {pipeline_mode = #tpu.pipeline_mode<synchronous>, transform_indices = @transform_4, window_bounds = array<i64: 1, 128>}, {pipeline_mode = #tpu.pipeline_mode<synchronous>, transform_indices = @transform_5, window_bounds = array<i64: 128, 128>}, {pipeline_mode = #tpu.pipeline_mode<synchronous>, transform_indices = @transform_6, window_bounds = array<i64: 1, 128>}, {transform_indices = @transform_7, window_bounds = array<i64: 4, 64, 128>}]} {
    %c0 = arith.constant 0 : index
    %c0_0 = arith.constant 0 : index
    %c0_1 = arith.constant 0 : index
    %0 = vector.load %arg2[%c0, %c0_0, %c0_1] : memref<4x64x64xbf16, #tpu.memory_space<vmem>>, vector<4x64x64xbf16>
    %1 = arith.extf %0 : vector<4x64x64xbf16> to vector<4x64x64xf32>
    %c0_2 = arith.constant 0 : index
    %c0_3 = arith.constant 0 : index
    %c0_4 = arith.constant 0 : index
    %2 = vector.load %arg3[%c0_2, %c0_3, %c0_4] : memref<4x64x1xf32, #tpu.memory_space<vmem>>, vector<4x64x1xf32>
    %3 = vector.broadcast %2 : vector<4x64x1xf32> to vector<4x64x64xf32>
    %4 = arith.mulf %1, %3 : vector<4x64x64xf32>
    %c0_5 = arith.constant 0 : index
    %c0_6 = arith.constant 0 : index
    %5 = vector.load %arg1[%c0_5, %c0_6] : memref<256x32xf32, #tpu.memory_space<vmem>>, vector<256x32xf32>
    %c0_7 = arith.constant 0 : index
    %c0_8 = arith.constant 0 : index
    %6 = vector.load %arg4[%c0_7, %c0_8] : memref<32x128xf32, #tpu.memory_space<vmem>>, vector<32x128xf32>
    %cst = arith.constant dense<0.000000e+00> : vector<256x128xf32>
    %7 = tpu.matmul %5, %6, %cst {dimension_numbers = #tpu.dot_dimension_numbers<[1], [0], [0], [1], [0, 0, 1, 1], [], []>} : vector<256x32xf32>, vector<32x128xf32>, vector<256x128xf32> -> vector<256x128xf32>
    %c0_9 = arith.constant 0 : index
    %c0_10 = arith.constant 0 : index
    %8 = vector.load %arg5[%c0_9, %c0_10] : memref<1x128xf32, #tpu.memory_space<vmem>>, vector<1x128xf32>
    %9 = vector.broadcast %8 : vector<1x128xf32> to vector<256x128xf32>
    %10 = arith.addf %7, %9 : vector<256x128xf32>
    %11 = vector.shape_cast %10 : vector<256x128xf32> to vector<4x64x128xf32>
    "tpu.trace_start"() <{level = 10 : i32, message = "bds,bsf->bdf"}> : () -> ()
    %cst_11 = arith.constant dense<0.000000e+00> : vector<4x64x128xf32>
    %12 = tpu.matmul %4, %11, %cst_11 {dimension_numbers = #tpu.dot_dimension_numbers<[2], [1], [1], [2], [0, 0, 0, 1, 1, 2], [0], [0]>} : vector<4x64x64xf32>, vector<4x64x128xf32>, vector<4x64x128xf32> -> vector<4x64x128xf32>
    "tpu.trace_stop"() : () -> ()
    %cst_12 = arith.constant 0.000000e+00 : f32
    %13 = vector.broadcast %cst_12 : f32 to vector<4x64x128xf32>
    %14 = arith.maximumf %12, %13 : vector<4x64x128xf32>
    %15 = vector.shape_cast %14 : vector<4x64x128xf32> to vector<256x128xf32>
    %c0_13 = arith.constant 0 : index
    %c0_14 = arith.constant 0 : index
    %16 = vector.load %arg6[%c0_13, %c0_14] : memref<128x128xf32, #tpu.memory_space<vmem>>, vector<128x128xf32>
    %cst_15 = arith.constant dense<0.000000e+00> : vector<256x128xf32>
    %17 = tpu.matmul %15, %16, %cst_15 {dimension_numbers = #tpu.dot_dimension_numbers<[1], [0], [0], [1], [0, 0, 1, 1], [], []>} : vector<256x128xf32>, vector<128x128xf32>, vector<256x128xf32> -> vector<256x128xf32>
    %c0_16 = arith.constant 0 : index
    %c0_17 = arith.constant 0 : index
    %18 = vector.load %arg7[%c0_16, %c0_17] : memref<1x128xf32, #tpu.memory_space<vmem>>, vector<1x128xf32>
    %19 = vector.broadcast %18 : vector<1x128xf32> to vector<256x128xf32>
    %20 = arith.addf %17, %19 : vector<256x128xf32>
    %21 = vector.shape_cast %20 : vector<256x128xf32> to vector<4x64x128xf32>
    "tpu.trace_start"() <{level = 10 : i32, message = "bds,bsf->bdf"}> : () -> ()
    %cst_18 = arith.constant dense<0.000000e+00> : vector<4x64x128xf32>
    %22 = tpu.matmul %4, %21, %cst_18 {dimension_numbers = #tpu.dot_dimension_numbers<[2], [1], [1], [2], [0, 0, 0, 1, 1, 2], [0], [0]>} : vector<4x64x64xf32>, vector<4x64x128xf32>, vector<4x64x128xf32> -> vector<4x64x128xf32>
    "tpu.trace_stop"() : () -> ()
    %c0_19 = arith.constant 0 : index
    %c0_20 = arith.constant 0 : index
    %c0_21 = arith.constant 0 : index
    %23 = vector.load %arg8[%c0_19, %c0_20, %c0_21] : memref<4x64x128xf32, #tpu.memory_space<vmem>>, vector<4x64x128xf32>
    tpu.vector_store %arg8[%c0_19, %c0_20, %c0_21], %22 {strides = array<i32>} : memref<4x64x128xf32, #tpu.memory_space<vmem>>, vector<4x64x128xf32>,
    return
  }
  func.func @transform_0(%arg0: i32) -> (i32, i32) {
    %c0_i32 = arith.constant 0 : i32
    %c0_i32_0 = arith.constant 0 : i32
    return %arg0, %c0_i32 : i32, i32
  }
  func.func @transform_1(%arg0: i32) -> (i32, i32, i32) {
    %c0_i32 = arith.constant 0 : i32
    %c0_i32_0 = arith.constant 0 : i32
    %c0_i32_1 = arith.constant 0 : i32
    return %arg0, %c0_i32, %c0_i32_0 : i32, i32, i32
  }
  func.func @transform_2(%arg0: i32) -> (i32, i32, i32) {
    %c0_i32 = arith.constant 0 : i32
    %c0_i32_0 = arith.constant 0 : i32
    %c0_i32_1 = arith.constant 0 : i32
    return %arg0, %c0_i32, %c0_i32_0 : i32, i32, i32
  }
  func.func @transform_3(%arg0: i32) -> (i32, i32) {
    %c0_i32 = arith.constant 0 : i32
    %c0_i32_0 = arith.constant 0 : i32
    %c0_i32_1 = arith.constant 0 : i32
    return %c0_i32, %c0_i32_0 : i32, i32
  }
  func.func @transform_4(%arg0: i32) -> (i32, i32) {
    %c0_i32 = arith.constant 0 : i32
    %c0_i32_0 = arith.constant 0 : i32
    %c0_i32_1 = arith.constant 0 : i32
    return %c0_i32, %c0_i32_0 : i32, i32
  }
  func.func @transform_5(%arg0: i32) -> (i32, i32) {
    %c0_i32 = arith.constant 0 : i32
    %c0_i32_0 = arith.constant 0 : i32
    %c0_i32_1 = arith.constant 0 : i32
    return %c0_i32, %c0_i32_0 : i32, i32
  }
  func.func @transform_6(%arg0: i32) -> (i32, i32) {
    %c0_i32 = arith.constant 0 : i32
    %c0_i32_0 = arith.constant 0 : i32
    %c0_i32_1 = arith.constant 0 : i32
    return %c0_i32, %c0_i32_0 : i32, i32
  }
  func.func @transform_7(%arg0: i32) -> (i32, i32, i32) {
    %c0_i32 = arith.constant 0 : i32
    %c0_i32_0 = arith.constant 0 : i32
    %c0_i32_1 = arith.constant 0 : i32
    return %arg0, %c0_i32, %c0_i32_0 : i32, i32, i32
  }
}

</mosaic_0001>

<llo_original>
// kernel: tpu_custom_call.1
$region0: #{tpu_custom_call.1}
  #allocation0 [shape = 'u32[]', space=smem, size = 0x4, offset = 0x4, fixed_abs, tag = 'smem constant byte address 0x4 - core index']
  #allocation1 [shape = 'u32[72,128]{1,0:T(1,128)}', space=vmem, size = 0x9000, scoped, tag = 'internal scratch']
  %s0 = inlined_call_operand.vmem [shape: f32[512,32], index: 0, kind: input, shape index: {}]
  %s1 = inlined_call_operand.vmem [shape: bf16[8,64,64], index: 1, kind: input, shape index: {}]
  %s2 = inlined_call_operand.vmem [shape: f32[8,64,1], index: 2, kind: input, shape index: {}]
  %s3 = inlined_call_operand.vmem [shape: f32[32,128], index: 3, kind: input, shape index: {}]
  %s4 = inlined_call_operand.vmem [shape: f32[1,128], index: 4, kind: input, shape index: {}]
  %s5 = inlined_call_operand.vmem [shape: f32[128,128], index: 5, kind: input, shape index: {}]
  %s6 = inlined_call_operand.vmem [shape: f32[1,128], index: 6, kind: input, shape index: {}]
  %s7 = inlined_call_operand.hbm [shape: f32[8,64,128], index: 7, kind: output, shape index: {}]
  %s8 = sld [smem:[#allocation0]]
  $region61: #{tpu_custom_call.1} parent=0
    _
  %s10 = ssub.s32 1, %s8
  %s11 = scalar_select 0, %s10, %s8
  $region1: #{tpu_custom_call.1} parent=0
    #allocation2 [shape = 'u8[262144]{0}', space=vmem, size = 0x40000, scoped, tag = 'output window, operand 0']
    #allocation3 [shape = 's32[2]{0}', space=sflag, size = 0x8, scoped, tag = 'scoped memory for tpu_custom_call.1']
    %12 = vsyncpa [#allocation3], 0
    %s13 = scalar_lea.sflag [#allocation3], 1
    %14 = vsyncpa %s13, 0
    loop: start=0, step=1, limit=4
    $region2: #{tpu_custom_call.1} parent=1 // loop_pre_header
      _
    $region3: #{tpu_custom_call.1} parent=1 // loop_header
      %s16 = sphi 0, %s20
      %p17 = scmp.ge.s32.totalorder %s16, 4
      %s26 = sphi 0, %s28
      %s29 = sphi 0, %s26
      %s30 = sphi 0, %s29
      %s46 = sphi 0, %s30
      %s52 = sphi 0, %s54
      %s55 = sphi 0, %s52
      %s56 = sphi 0, %s55
      %s72 = sphi 0, %s56
      %s78 = sphi 0, %s80
      %s81 = sphi 0, %s78
      %s82 = sphi 0, %s81
      %s98 = sphi 0, %s82
      %s102 = sphi 0, %s102
      %s104 = sphi 0, %s102
      %s105 = sphi 0, %s104
      %s119 = sphi 0, %s105
      %s123 = sphi 0, %s123
      %s125 = sphi 0, %s123
      %s126 = sphi 0, %s125
      %s140 = sphi 0, %s126
      %s144 = sphi 0, %s144
      %s146 = sphi 0, %s144
      %s147 = sphi 0, %s146
      %s161 = sphi 0, %s147
      %s165 = sphi 0, %s165
      %s167 = sphi 0, %s165
      %s168 = sphi 0, %s167
      %s182 = sphi 0, %s168
      %s188 = sphi 0, %s190
      %s191 = sphi 0, %s188
      %s192 = sphi 0, %s191
      %s208 = sphi 0, %s192
    $region4: #{tpu_custom_call.1} parent=1 // loop_header_branch
      %19 = sbr.rel (%p17) target = $region8
    $region5: #{tpu_custom_call.1} parent=1 // loop_body
      %s21 = ssub.s32 %s16, 1
      %s22 = ssub.s32 %s16, 2
      %s23 = sadd.s32 %s16, 1
      %s24 = ssub.s32 %s16, %s23
      %p25 = scmp.eq.s32.totalorder %s24, 0
      %s27 = sadd.s32 %s26, 1
      %s28 = scalar_select %p25, %s26, %s27
      %p31 = pneg %p25
      %p32 = scmp.eq.s32.totalorder %s16, 1
      %p33 = por %p31, %p32
      %p34 = scmp.ne.s32.totalorder %s26, %s29
      %p35 = scmp.eq.s32.totalorder %s16, 0
      %p36 = por %p34, %p35
      %p37 = scmp.ne.s32.totalorder %s26, %s29
      %p38 = scmp.eq.s32.totalorder %s21, 1
      %p39 = por %p37, %p38
      %p40 = scmp.ne.s32.totalorder %s29, %s30
      %p41 = scmp.eq.s32.totalorder %s21, 0
      %p42 = por %p40, %p41
      %p43 = scmp.ne.s32.totalorder %s29, %s30
      %p44 = scmp.eq.s32.totalorder %s22, 1
      %p45 = por %p43, %p44
      %p47 = scmp.ne.s32.totalorder %s30, %s46
      %p48 = scmp.eq.s32.totalorder %s22, 0
      %p49 = por %p47, %p48
      %s50 = ssub.s32 %s16, %s23
      %p51 = scmp.eq.s32.totalorder %s50, 0
      %s53 = sadd.s32 %s52, 1
      %s54 = scalar_select %p51, %s52, %s53
      %p57 = pneg %p51
      %p58 = scmp.eq.s32.totalorder %s16, 1
      %p59 = por %p57, %p58
      %p60 = scmp.ne.s32.totalorder %s52, %s55
      %p61 = scmp.eq.s32.totalorder %s16, 0
      %p62 = por %p60, %p61
      %p63 = scmp.ne.s32.totalorder %s52, %s55
      %p64 = scmp.eq.s32.totalorder %s21, 1
      %p65 = por %p63, %p64
      %p66 = scmp.ne.s32.totalorder %s55, %s56
      %p67 = scmp.eq.s32.totalorder %s21, 0
      %p68 = por %p66, %p67
      %p69 = scmp.ne.s32.totalorder %s55, %s56
      %p70 = scmp.eq.s32.totalorder %s22, 1
      %p71 = por %p69, %p70
      %p73 = scmp.ne.s32.totalorder %s56, %s72
      %p74 = scmp.eq.s32.totalorder %s22, 0
      %p75 = por %p73, %p74
      %s76 = ssub.s32 %s16, %s23
      %p77 = scmp.eq.s32.totalorder %s76, 0
      %s79 = sadd.s32 %s78, 1
      %s80 = scalar_select %p77, %s78, %s79
      %p83 = pneg %p77
      %p84 = scmp.eq.s32.totalorder %s16, 1
      %p85 = por %p83, %p84
      %p86 = scmp.ne.s32.totalorder %s78, %s81
      %p87 = scmp.eq.s32.totalorder %s16, 0
      %p88 = por %p86, %p87
      %p89 = scmp.ne.s32.totalorder %s78, %s81
      %p90 = scmp.eq.s32.totalorder %s21, 1
      %p91 = por %p89, %p90
      %p92 = scmp.ne.s32.totalorder %s81, %s82
      %p93 = scmp.eq.s32.totalorder %s21, 0
      %p94 = por %p92, %p93
      %p95 = scmp.ne.s32.totalorder %s81, %s82
      %p96 = scmp.eq.s32.totalorder %s22, 1
      %p97 = por %p95, %p96
      %p99 = scmp.ne.s32.totalorder %s82, %s98
      %p100 = scmp.eq.s32.totalorder %s22, 0
      %p101 = por %p99, %p100
      %s103 = sadd.s32 %s102, 1
      %p106 = scmp.eq.s32.totalorder %s16, 1
      %p107 = scmp.ne.s32.totalorder %s102, %s104
      %p108 = scmp.eq.s32.totalorder %s16, 0
      %p109 = por %p107, %p108
      %p110 = scmp.ne.s32.totalorder %s102, %s104
      %p111 = scmp.eq.s32.totalorder %s21, 1
      %p112 = por %p110, %p111
      %p113 = scmp.ne.s32.totalorder %s104, %s105
      %p114 = scmp.eq.s32.totalorder %s21, 0
      %p115 = por %p113, %p114
      %p116 = scmp.ne.s32.totalorder %s104, %s105
      %p117 = scmp.eq.s32.totalorder %s22, 1
      %p118 = por %p116, %p117
      %p120 = scmp.ne.s32.totalorder %s105, %s119
      %p121 = scmp.eq.s32.totalorder %s22, 0
      %p122 = por %p120, %p121
      %s124 = sadd.s32 %s123, 1
      %p127 = scmp.eq.s32.totalorder %s16, 1
      %p128 = scmp.ne.s32.totalorder %s123, %s125
      %p129 = scmp.eq.s32.totalorder %s16, 0
      %p130 = por %p128, %p129
      %p131 = scmp.ne.s32.totalorder %s123, %s125
      %p132 = scmp.eq.s32.totalorder %s21, 1
      %p133 = por %p131, %p132
      %p134 = scmp.ne.s32.totalorder %s125, %s126
      %p135 = scmp.eq.s32.totalorder %s21, 0
      %p136 = por %p134, %p135
      %p137 = scmp.ne.s32.totalorder %s125, %s126
      %p138 = scmp.eq.s32.totalorder %s22, 1
      %p139 = por %p137, %p138
      %p141 = scmp.ne.s32.totalorder %s126, %s140
      %p142 = scmp.eq.s32.totalorder %s22, 0
      %p143 = por %p141, %p142
      %s145 = sadd.s32 %s144, 1
      %p148 = scmp.eq.s32.totalorder %s16, 1
      %p149 = scmp.ne.s32.totalorder %s144, %s146
      %p150 = scmp.eq.s32.totalorder %s16, 0
      %p151 = por %p149, %p150
      %p152 = scmp.ne.s32.totalorder %s144, %s146
      %p153 = scmp.eq.s32.totalorder %s21, 1
      %p154 = por %p152, %p153
      %p155 = scmp.ne.s32.totalorder %s146, %s147
      %p156 = scmp.eq.s32.totalorder %s21, 0
      %p157 = por %p155, %p156
      %p158 = scmp.ne.s32.totalorder %s146, %s147
      %p159 = scmp.eq.s32.totalorder %s22, 1
      %p160 = por %p158, %p159
      %p162 = scmp.ne.s32.totalorder %s147, %s161
      %p163 = scmp.eq.s32.totalorder %s22, 0
      %p164 = por %p162, %p163
      %s166 = sadd.s32 %s165, 1
      %p169 = scmp.eq.s32.totalorder %s16, 1
      %p170 = scmp.ne.s32.totalorder %s165, %s167
      %p171 = scmp.eq.s32.totalorder %s16, 0
      %p172 = por %p170, %p171
      %p173 = scmp.ne.s32.totalorder %s165, %s167
      %p174 = scmp.eq.s32.totalorder %s21, 1
      %p175 = por %p173, %p174
      %p176 = scmp.ne.s32.totalorder %s167, %s168
      %p177 = scmp.eq.s32.totalorder %s21, 0
      %p178 = por %p176, %p177
      %p179 = scmp.ne.s32.totalorder %s167, %s168
      %p180 = scmp.eq.s32.totalorder %s22, 1
      %p181 = por %p179, %p180
      %p183 = scmp.ne.s32.totalorder %s168, %s182
      %p184 = scmp.eq.s32.totalorder %s22, 0
      %p185 = por %p183, %p184
      %s186 = ssub.s32 %s16, %s23
      %p187 = scmp.eq.s32.totalorder %s186, 0
      %s189 = sadd.s32 %s188, 1
      %s190 = scalar_select %p187, %s188, %s189
      %p193 = pneg %p187
      %p194 = scmp.eq.s32.totalorder %s16, 1
      %p195 = por %p193, %p194
      %p196 = scmp.ne.s32.totalorder %s188, %s191
      %p197 = scmp.eq.s32.totalorder %s16, 0
      %p198 = por %p196, %p197
      %p199 = scmp.ne.s32.totalorder %s188, %s191
      %p200 = scmp.eq.s32.totalorder %s21, 1
      %p201 = por %p199, %p200
      %p202 = scmp.ne.s32.totalorder %s191, %s192
      %p203 = scmp.eq.s32.totalorder %s21, 0
      %p204 = por %p202, %p203
      %p205 = scmp.ne.s32.totalorder %s191, %s192
      %p206 = scmp.eq.s32.totalorder %s22, 1
      %p207 = por %p205, %p206
      %p209 = scmp.ne.s32.totalorder %s192, %s208
      %p210 = scmp.eq.s32.totalorder %s22, 0
      %p211 = por %p209, %p210
      %p212 = scmp.le.s32.totalorder 1, %s16
      %p213 = scmp.lt.s32.totalorder %s16, 3
      %p214 = pnand %p212, %p213
      %p215 = pneg %p214
      // Predicated region
      $region9: #{tpu_custom_call.1} parent=5 // pred_check
        _
      $region10: #{tpu_custom_call.1} parent=5 // pred_check_branch
        %217 = sbr.rel (%p214) target = $region12
      $region11: #{tpu_custom_call.1} parent=5 // pred_region
        %s218 = ssub.s32 %s16, 1
        // Predicated region
        $region13: #{tpu_custom_call.1} parent=11 // pred_check
          %p219 = pneg %p115
        $region14: #{tpu_custom_call.1} parent=11 // pred_check_branch
          %221 = sbr.rel (%p219) target = $region16
        $region15: #{tpu_custom_call.1} parent=11 // pred_region
          _
        $region16: #{tpu_custom_call.1} parent=11 // pred_fallthru
          _
        // Predicated region
        $region17: #{tpu_custom_call.1} parent=11 // pred_check
          %p222 = pneg %p136
        $region18: #{tpu_custom_call.1} parent=11 // pred_check_branch
          %224 = sbr.rel (%p222) target = $region20
        $region19: #{tpu_custom_call.1} parent=11 // pred_region
          _
        $region20: #{tpu_custom_call.1} parent=11 // pred_fallthru
          _
        // Predicated region
        $region21: #{tpu_custom_call.1} parent=11 // pred_check
          %p225 = pneg %p157
        $region22: #{tpu_custom_call.1} parent=11 // pred_check_branch
          %227 = sbr.rel (%p225) target = $region24
        $region23: #{tpu_custom_call.1} parent=11 // pred_region
          _
        $region24: #{tpu_custom_call.1} parent=11 // pred_fallthru
          _
        // Predicated region
        $region25: #{tpu_custom_call.1} parent=11 // pred_check
          %p228 = pneg %p178
        $region26: #{tpu_custom_call.1} parent=11 // pred_check_branch
          %230 = sbr.rel (%p228) target = $region28
        $region27: #{tpu_custom_call.1} parent=11 // pred_region
          _
        $region28: #{tpu_custom_call.1} parent=11 // pred_fallthru
          _
      $region12: #{tpu_custom_call.1} parent=5 // pred_fallthru
        _
      %p231 = scmp.lt.s32.totalorder %s16, 2
      // Predicated region
      $region29: #{tpu_custom_call.1} parent=5 // pred_check
        %p232 = pneg %p231
      $region30: #{tpu_custom_call.1} parent=5 // pred_check_branch
        %234 = sbr.rel (%p232) target = $region32
      $region31: #{tpu_custom_call.1} parent=5 // pred_region
        // Predicated region
        $region33: #{tpu_custom_call.1} parent=31 // pred_check
          %p235 = pneg %p36
        $region34: #{tpu_custom_call.1} parent=31 // pred_check_branch
          %237 = sbr.rel (%p235) target = $region36
        $region35: #{tpu_custom_call.1} parent=31 // pred_region
          %s238 = smul.u32 32, %s16
          %p239 = scmp.lt.s32.totalorder %s238, 63
          %s240 = scalar_select %p239, %s238, 63
          %s241 = smul.addr %s240, 8
          %s242 = scalar_lea.vmem %s0, %s241
          %s243 = smul.u32 32, %s16
        $region36: #{tpu_custom_call.1} parent=31 // pred_fallthru
          _
        // Predicated region
        $region37: #{tpu_custom_call.1} parent=31 // pred_check
          %p244 = pneg %p62
        $region38: #{tpu_custom_call.1} parent=31 // pred_check_branch
          %246 = sbr.rel (%p244) target = $region40
        $region39: #{tpu_custom_call.1} parent=31 // pred_region
          %s247 = smul.u32 4, %s16
          %p248 = scmp.lt.s32.totalorder %s247, 7
          %s249 = scalar_select %p248, %s247, 7
          %s250 = smul.addr %s249, 8
          %s251 = smul.addr %s250, 4
          %s252 = scalar_lea.vmem %s1, %s251
          %s253 = smul.u32 4, %s16
        $region40: #{tpu_custom_call.1} parent=31 // pred_fallthru
          _
        // Predicated region
        $region41: #{tpu_custom_call.1} parent=31 // pred_check
          %p254 = pneg %p88
        $region42: #{tpu_custom_call.1} parent=31 // pred_check_branch
          %256 = sbr.rel (%p254) target = $region44
        $region43: #{tpu_custom_call.1} parent=31 // pred_region
          %s257 = smul.u32 4, %s16
          %p258 = scmp.lt.s32.totalorder %s257, 7
          %s259 = scalar_select %p258, %s257, 7
          %s260 = smul.addr %s259, 8
          %s261 = smul.addr %s260, 8
          %s262 = scalar_lea.vmem %s2, %s261
          %s263 = smul.u32 4, %s16
        $region44: #{tpu_custom_call.1} parent=31 // pred_fallthru
          _
      $region32: #{tpu_custom_call.1} parent=5 // pred_fallthru
        _
      %p264 = scmp.le.s32.totalorder 1, %s16
      %p265 = scmp.lt.s32.totalorder %s16, 3
      %p266 = pnand %p264, %p265
      %p267 = pneg %p266
      // Predicated region
      $region45: #{tpu_custom_call.1} parent=5 // pred_check
        _
      $region46: #{tpu_custom_call.1} parent=5 // pred_check_branch
        %269 = sbr.rel (%p266) target = $region48
      $region47: #{tpu_custom_call.1} parent=5 // pred_region
        %s270 = ssub.s32 %s16, 1
        %s271 = smul.u32 32, %s21
        %p272 = scmp.lt.s32.totalorder %s271, 63
        %s273 = scalar_select %p272, %s271, 63
        %s274 = smul.addr %s273, 8
        %s275 = scalar_lea.vmem %s0, %s274
        %p276 = pneg %p42
        %p277 = pneg %p39
        %s278 = smul.u32 4, %s21
        %p279 = scmp.lt.s32.totalorder %s278, 7
        %s280 = scalar_select %p279, %s278, 7
        %s281 = smul.addr %s280, 8
        %s282 = smul.addr %s281, 4
        %s283 = scalar_lea.vmem %s1, %s282
        %p284 = pneg %p68
        %p285 = pneg %p65
        %s286 = smul.u32 4, %s21
        %p287 = scmp.lt.s32.totalorder %s286, 7
        %s288 = scalar_select %p287, %s286, 7
        %s289 = smul.addr %s288, 8
        %s290 = smul.addr %s289, 8
        %s291 = scalar_lea.vmem %s2, %s290
        %p292 = pneg %p94
        %p293 = pneg %p91
        %p294 = pneg %p115
        %p295 = pneg %p112
        %p296 = pneg %p136
        %p297 = pneg %p133
        %p298 = pneg %p157
        %p299 = pneg %p154
        %p300 = pneg %p178
        %p301 = pneg %p175
        %p302 = pneg %p204
        %p303 = pneg %p201
        %s304 = sand.u32 %s191, 1
        %s305 = scalar_lea.sflag [#allocation3], %s304
        %s306 = sand.u32 %s191, 1
        %s307 = smul.addr %s306, 256
        %s308 = scalar_lea.vmem [#allocation2], %s307
        %s309 = smul.u32 32, %s21
        %p310 = scmp.lt.s32.totalorder %s309, 63
        %s311 = scalar_select %p310, %s309, 63
        %s312 = smul.addr %s311, 8
        %s313 = scalar_lea.vmem %s0, %s312
        %s314 = smul.u32 32, %s21
        %s315 = smul.u32 4, %s21
        %p316 = scmp.lt.s32.totalorder %s315, 7
        %s317 = scalar_select %p316, %s315, 7
        %s318 = smul.addr %s317, 8
        %s319 = smul.addr %s318, 4
        %s320 = scalar_lea.vmem %s1, %s319
        %s321 = smul.u32 4, %s21
        %s322 = smul.u32 4, %s21
        %p323 = scmp.lt.s32.totalorder %s322, 7
        %s324 = scalar_select %p323, %s322, 7
        %s325 = smul.addr %s324, 8
        %s326 = smul.addr %s325, 8
        %s327 = scalar_lea.vmem %s2, %s326
        %s328 = smul.u32 4, %s21
        %s329 = smul.u32 4, %s21
        %v330 = vld [vmem:[%s320] sm:$0xf]
        %v331 = vld [vmem:[%s320 + $0x4] sm:$0xf]
        %v332 = vld [vmem:[%s320 + $0x8] sm:$0xf]
        %v333 = vld [vmem:[%s320 + $0xc] sm:$0xf]
        %v334 = vld [vmem:[%s320 + $0x10] sm:$0xf]
        %v335 = vld [vmem:[%s320 + $0x14] sm:$0xf]
        %v336 = vld [vmem:[%s320 + $0x18] sm:$0xf]
        %v337 = vld [vmem:[%s320 + $0x1c] sm:$0xf]
        %v338 = vld [vmem:[%s320 + $0x20] sm:$0xf]
        %v339 = vld [vmem:[%s320 + $0x24] sm:$0xf]
        %v340 = vld [vmem:[%s320 + $0x28] sm:$0xf]
        %v341 = vld [vmem:[%s320 + $0x2c] sm:$0xf]
        %v342 = vld [vmem:[%s320 + $0x30] sm:$0xf]
        %v343 = vld [vmem:[%s320 + $0x34] sm:$0xf]
        %v344 = vld [vmem:[%s320 + $0x38] sm:$0xf]
        %v345 = vld [vmem:[%s320 + $0x3c] sm:$0xf]
        %v346 = vld [vmem:[%s320 + $0x40] sm:$0xf]
        %v347 = vld [vmem:[%s320 + $0x44] sm:$0xf]
        %v348 = vld [vmem:[%s320 + $0x48] sm:$0xf]
        %v349 = vld [vmem:[%s320 + $0x4c] sm:$0xf]
        %v350 = vld [vmem:[%s320 + $0x50] sm:$0xf]
        %v351 = vld [vmem:[%s320 + $0x54] sm:$0xf]
        %v352 = vld [vmem:[%s320 + $0x58] sm:$0xf]
        %v353 = vld [vmem:[%s320 + $0x5c] sm:$0xf]
        %v354 = vld [vmem:[%s320 + $0x60] sm:$0xf]
        %v355 = vld [vmem:[%s320 + $0x64] sm:$0xf]
        %v356 = vld [vmem:[%s320 + $0x68] sm:$0xf]
        %v357 = vld [vmem:[%s320 + $0x6c] sm:$0xf]
        %v358 = vld [vmem:[%s320 + $0x70] sm:$0xf]
        %v359 = vld [vmem:[%s320 + $0x74] sm:$0xf]
        %v360 = vld [vmem:[%s320 + $0x78] sm:$0xf]
        %v361 = vld [vmem:[%s320 + $0x7c] sm:$0xf]
        %v362 = vunpack.c.l.bf16 %v330
        %v363 = vunpack.c.l.bf16 %v331
        %v364 = vunpack.c.l.bf16 %v332
        %v365 = vunpack.c.l.bf16 %v333
        %v366 = vunpack.c.l.bf16 %v334
        %v367 = vunpack.c.l.bf16 %v335
        %v368 = vunpack.c.l.bf16 %v336
        %v369 = vunpack.c.l.bf16 %v337
        %v370 = vunpack.c.l.bf16 %v338
        %v371 = vunpack.c.l.bf16 %v339
        %v372 = vunpack.c.l.bf16 %v340
        %v373 = vunpack.c.l.bf16 %v341
        %v374 = vunpack.c.l.bf16 %v342
        %v375 = vunpack.c.l.bf16 %v343
        %v376 = vunpack.c.l.bf16 %v344
        %v377 = vunpack.c.l.bf16 %v345
        %v378 = vunpack.c.l.bf16 %v346
        %v379 = vunpack.c.l.bf16 %v347
        %v380 = vunpack.c.l.bf16 %v348
        %v381 = vunpack.c.l.bf16 %v349
        %v382 = vunpack.c.l.bf16 %v350
        %v383 = vunpack.c.l.bf16 %v351
        %v384 = vunpack.c.l.bf16 %v352
        %v385 = vunpack.c.l.bf16 %v353
        %v386 = vunpack.c.l.bf16 %v354
        %v387 = vunpack.c.l.bf16 %v355
        %v388 = vunpack.c.l.bf16 %v356
        %v389 = vunpack.c.l.bf16 %v357
        %v390 = vunpack.c.l.bf16 %v358
        %v391 = vunpack.c.l.bf16 %v359
        %v392 = vunpack.c.l.bf16 %v360
        %v393 = vunpack.c.l.bf16 %v361
        %v394 = vld [vmem:[%s327] sm:$0xff]
        %v395 = vld [vmem:[%s327 + $0x8] sm:$0xff]
        %v396 = vld [vmem:[%s327 + $0x10] sm:$0xff]
        %v397 = vld [vmem:[%s327 + $0x18] sm:$0xff]
        %v398 = vld [vmem:[%s327 + $0x20] sm:$0xff]
        %v399 = vld [vmem:[%s327 + $0x28] sm:$0xff]
        %v400 = vld [vmem:[%s327 + $0x30] sm:$0xff]
        %v401 = vld [vmem:[%s327 + $0x38] sm:$0xff]
        %v402 = vld [vmem:[%s327 + $0x40] sm:$0xff]
        %v403 = vld [vmem:[%s327 + $0x48] sm:$0xff]
        %v404 = vld [vmem:[%s327 + $0x50] sm:$0xff]
        %v405 = vld [vmem:[%s327 + $0x58] sm:$0xff]
        %v406 = vld [vmem:[%s327 + $0x60] sm:$0xff]
        %v407 = vld [vmem:[%s327 + $0x68] sm:$0xff]
        %v408 = vld [vmem:[%s327 + $0x70] sm:$0xff]
        %v409 = vld [vmem:[%s327 + $0x78] sm:$0xff]
        %v410 = vld [vmem:[%s327 + $0x80] sm:$0xff]
        %v411 = vld [vmem:[%s327 + $0x88] sm:$0xff]
        %v412 = vld [vmem:[%s327 + $0x90] sm:$0xff]
        %v413 = vld [vmem:[%s327 + $0x98] sm:$0xff]
        %v414 = vld [vmem:[%s327 + $0xa0] sm:$0xff]
        %v415 = vld [vmem:[%s327 + $0xa8] sm:$0xff]
        %v416 = vld [vmem:[%s327 + $0xb0] sm:$0xff]
        %v417 = vld [vmem:[%s327 + $0xb8] sm:$0xff]
        %v418 = vld [vmem:[%s327 + $0xc0] sm:$0xff]
        %v419 = vld [vmem:[%s327 + $0xc8] sm:$0xff]
        %v420 = vld [vmem:[%s327 + $0xd0] sm:$0xff]
        %v421 = vld [vmem:[%s327 + $0xd8] sm:$0xff]
        %v422 = vld [vmem:[%s327 + $0xe0] sm:$0xff]
        %v423 = vld [vmem:[%s327 + $0xe8] sm:$0xff]
        %v424 = vld [vmem:[%s327 + $0xf0] sm:$0xff]
        %v425 = vld [vmem:[%s327 + $0xf8] sm:$0xff]
        %427 = vset.pattern.permute.xlu0 0
        %428 = vperm.xlu0 %427, %v394
        %v429 = vpop.permute.xlu0 %428
        %432 = vset.pattern.permute.xlu0 0
        %433 = vperm.xlu0 %432, %v395
        %v434 = vpop.permute.xlu0 %433
        %437 = vset.pattern.permute.xlu0 0
        %438 = vperm.xlu0 %437, %v396
        %v439 = vpop.permute.xlu0 %438
        %442 = vset.pattern.permute.xlu0 0
        %443 = vperm.xlu0 %442, %v397
        %v444 = vpop.permute.xlu0 %443
        %447 = vset.pattern.permute.xlu0 0
        %448 = vperm.xlu0 %447, %v398
        %v449 = vpop.permute.xlu0 %448
        %452 = vset.pattern.permute.xlu0 0
        %453 = vperm.xlu0 %452, %v399
        %v454 = vpop.permute.xlu0 %453
        %457 = vset.pattern.permute.xlu0 0
        %458 = vperm.xlu0 %457, %v400
        %v459 = vpop.permute.xlu0 %458
        %462 = vset.pattern.permute.xlu0 0
        %463 = vperm.xlu0 %462, %v401
        %v464 = vpop.permute.xlu0 %463
        %467 = vset.pattern.permute.xlu0 0
        %468 = vperm.xlu0 %467, %v402
        %v469 = vpop.permute.xlu0 %468
        %472 = vset.pattern.permute.xlu0 0
        %473 = vperm.xlu0 %472, %v403
        %v474 = vpop.permute.xlu0 %473
        %477 = vset.pattern.permute.xlu0 0
        %478 = vperm.xlu0 %477, %v404
        %v479 = vpop.permute.xlu0 %478
        %482 = vset.pattern.permute.xlu0 0
        %483 = vperm.xlu0 %482, %v405
        %v484 = vpop.permute.xlu0 %483
        %487 = vset.pattern.permute.xlu0 0
        %488 = vperm.xlu0 %487, %v406
        %v489 = vpop.permute.xlu0 %488
        %492 = vset.pattern.permute.xlu0 0
        %493 = vperm.xlu0 %492, %v407
        %v494 = vpop.permute.xlu0 %493
        %497 = vset.pattern.permute.xlu0 0
        %498 = vperm.xlu0 %497, %v408
        %v499 = vpop.permute.xlu0 %498
        %502 = vset.pattern.permute.xlu0 0
        %503 = vperm.xlu0 %502, %v409
        %v504 = vpop.permute.xlu0 %503
        %507 = vset.pattern.permute.xlu0 0
        %508 = vperm.xlu0 %507, %v410
        %v509 = vpop.permute.xlu0 %508
        %512 = vset.pattern.permute.xlu0 0
        %513 = vperm.xlu0 %512, %v411
        %v514 = vpop.permute.xlu0 %513
        %517 = vset.pattern.permute.xlu0 0
        %518 = vperm.xlu0 %517, %v412
        %v519 = vpop.permute.xlu0 %518
        %522 = vset.pattern.permute.xlu0 0
        %523 = vperm.xlu0 %522, %v413
        %v524 = vpop.permute.xlu0 %523
        %527 = vset.pattern.permute.xlu0 0
        %528 = vperm.xlu0 %527, %v414
        %v529 = vpop.permute.xlu0 %528
        %532 = vset.pattern.permute.xlu0 0
        %533 = vperm.xlu0 %532, %v415
        %v534 = vpop.permute.xlu0 %533
        %537 = vset.pattern.permute.xlu0 0
        %538 = vperm.xlu0 %537, %v416
        %v539 = vpop.permute.xlu0 %538
        %542 = vset.pattern.permute.xlu0 0
        %543 = vperm.xlu0 %542, %v417
        %v544 = vpop.permute.xlu0 %543
        %547 = vset.pattern.permute.xlu0 0
        %548 = vperm.xlu0 %547, %v418
        %v549 = vpop.permute.xlu0 %548
        %552 = vset.pattern.permute.xlu0 0
        %553 = vperm.xlu0 %552, %v419
        %v554 = vpop.permute.xlu0 %553
        %557 = vset.pattern.permute.xlu0 0
        %558 = vperm.xlu0 %557, %v420
        %v559 = vpop.permute.xlu0 %558
        %562 = vset.pattern.permute.xlu0 0
        %563 = vperm.xlu0 %562, %v421
        %v564 = vpop.permute.xlu0 %563
        %567 = vset.pattern.permute.xlu0 0
        %568 = vperm.xlu0 %567, %v422
        %v569 = vpop.permute.xlu0 %568
        %572 = vset.pattern.permute.xlu0 0
        %573 = vperm.xlu0 %572, %v423
        %v574 = vpop.permute.xlu0 %573
        %577 = vset.pattern.permute.xlu0 0
        %578 = vperm.xlu0 %577, %v424
        %v579 = vpop.permute.xlu0 %578
        %582 = vset.pattern.permute.xlu0 0
        %583 = vperm.xlu0 %582, %v425
        %v584 = vpop.permute.xlu0 %583
        %v586 = vmul.f32 %v362, %v429
        %v587 = vmul.f32 %v363, %v434
        %v588 = vmul.f32 %v364, %v439
        %v589 = vmul.f32 %v365, %v444
        %v590 = vmul.f32 %v366, %v449
        %v591 = vmul.f32 %v367, %v454
        %v592 = vmul.f32 %v368, %v459
        %v593 = vmul.f32 %v369, %v464
        %v594 = vmul.f32 %v370, %v469
        %v595 = vmul.f32 %v371, %v474
        %v596 = vmul.f32 %v372, %v479
        %v597 = vmul.f32 %v373, %v484
        %v598 = vmul.f32 %v374, %v489
        %v599 = vmul.f32 %v375, %v494
        %v600 = vmul.f32 %v376, %v499
        %v601 = vmul.f32 %v377, %v504
        %v602 = vmul.f32 %v378, %v509
        %v603 = vmul.f32 %v379, %v514
        %v604 = vmul.f32 %v380, %v519
        %v605 = vmul.f32 %v381, %v524
        %v606 = vmul.f32 %v382, %v529
        %v607 = vmul.f32 %v383, %v534
        %v608 = vmul.f32 %v384, %v539
        %v609 = vmul.f32 %v385, %v544
        %v610 = vmul.f32 %v386, %v549
        %v611 = vmul.f32 %v387, %v554
        %v612 = vmul.f32 %v388, %v559
        %v613 = vmul.f32 %v389, %v564
        %v614 = vmul.f32 %v390, %v569
        %v615 = vmul.f32 %v391, %v574
        %v616 = vmul.f32 %v392, %v579
        %v617 = vmul.f32 %v393, %v584
        %v618 = vld [vmem:[%s313] sm:$0xff]
        %v619 = vld [vmem:[%s313 + $0x8] sm:$0xff]
        %v620 = vld [vmem:[%s313 + $0x10] sm:$0xff]
        %v621 = vld [vmem:[%s313 + $0x18] sm:$0xff]
        %v622 = vld [vmem:[%s313 + $0x20] sm:$0xff]
        %v623 = vld [vmem:[%s313 + $0x28] sm:$0xff]
        %v624 = vld [vmem:[%s313 + $0x30] sm:$0xff]
        %v625 = vld [vmem:[%s313 + $0x38] sm:$0xff]
        %v626 = vld [vmem:[%s313 + $0x40] sm:$0xff]
        %v627 = vld [vmem:[%s313 + $0x48] sm:$0xff]
        %v628 = vld [vmem:[%s313 + $0x50] sm:$0xff]
        %v629 = vld [vmem:[%s313 + $0x58] sm:$0xff]
        %v630 = vld [vmem:[%s313 + $0x60] sm:$0xff]
        %v631 = vld [vmem:[%s313 + $0x68] sm:$0xff]
        %v632 = vld [vmem:[%s313 + $0x70] sm:$0xff]
        %v633 = vld [vmem:[%s313 + $0x78] sm:$0xff]
        %v634 = vld [vmem:[%s313 + $0x80] sm:$0xff]
        %v635 = vld [vmem:[%s313 + $0x88] sm:$0xff]
        %v636 = vld [vmem:[%s313 + $0x90] sm:$0xff]
        %v637 = vld [vmem:[%s313 + $0x98] sm:$0xff]
        %v638 = vld [vmem:[%s313 + $0xa0] sm:$0xff]
        %v639 = vld [vmem:[%s313 + $0xa8] sm:$0xff]
        %v640 = vld [vmem:[%s313 + $0xb0] sm:$0xff]
        %v641 = vld [vmem:[%s313 + $0xb8] sm:$0xff]
        %v642 = vld [vmem:[%s313 + $0xc0] sm:$0xff]
        %v643 = vld [vmem:[%s313 + $0xc8] sm:$0xff]
        %v644 = vld [vmem:[%s313 + $0xd0] sm:$0xff]
        %v645 = vld [vmem:[%s313 + $0xd8] sm:$0xff]
        %v646 = vld [vmem:[%s313 + $0xe0] sm:$0xff]
        %v647 = vld [vmem:[%s313 + $0xe8] sm:$0xff]
        %v648 = vld [vmem:[%s313 + $0xf0] sm:$0xff]
        %v649 = vld [vmem:[%s313 + $0xf8] sm:$0xff]
        %v650 = vld [vmem:[%s3] sm:$0xff]
        %v651 = vld [vmem:[%s3 + $0x8] sm:$0xff]
        %v652 = vld [vmem:[%s3 + $0x10] sm:$0xff]
        %v653 = vld [vmem:[%s3 + $0x18] sm:$0xff]
        %v654 = vld [vmem:[%s4] sm:$0x1]
        %v656 = vperm.slane %v654, 0
        %vm658 = vcmask 261120
        %v660 = vsel %vm658, %v618, 0
        %v663 = vsel %vm658, %v619, 0
        %v666 = vsel %vm658, %v620, 0
        %v669 = vsel %vm658, %v621, 0
        %v672 = vsel %vm658, %v622, 0
        %v675 = vsel %vm658, %v623, 0
        %v678 = vsel %vm658, %v624, 0
        %v681 = vsel %vm658, %v625, 0
        %v684 = vsel %vm658, %v626, 0
        %v687 = vsel %vm658, %v627, 0
        %v690 = vsel %vm658, %v628, 0
        %v693 = vsel %vm658, %v629, 0
        %v696 = vsel %vm658, %v630, 0
        %v699 = vsel %vm658, %v631, 0
        %v702 = vsel %vm658, %v632, 0
        %v705 = vsel %vm658, %v633, 0
        %v708 = vsel %vm658, %v634, 0
        %v711 = vsel %vm658, %v635, 0
        %v714 = vsel %vm658, %v636, 0
        %v717 = vsel %vm658, %v637, 0
        %v720 = vsel %vm658, %v638, 0
        %v723 = vsel %vm658, %v639, 0
        %v726 = vsel %vm658, %v640, 0
        %v729 = vsel %vm658, %v641, 0
        %v732 = vsel %vm658, %v642, 0
        %v735 = vsel %vm658, %v643, 0
        %v738 = vsel %vm658, %v644, 0
        %v741 = vsel %vm658, %v645, 0
        %v744 = vsel %vm658, %v646, 0
        %v747 = vsel %vm658, %v647, 0
        %v750 = vsel %vm658, %v648, 0
        %v753 = vsel %vm658, %v649, 0
        %755 = vmatpush.msra.mxu0 0.0
        %756 = vmatpush.msra.mxu0 0.0
        %757 = vmatpush.msra.mxu0 0.0
        %758 = vmatpush.msra.mxu0 0.0
        %759 = vmatpush.msra.mxu0 0.0
        %760 = vmatpush.msra.mxu0 0.0
        %761 = vmatpush.msra.mxu0 0.0
        %762 = vmatpush.msra.mxu0 0.0
        %763 = vmatpush.msra.mxu0 0.0
        %764 = vmatpush.msra.mxu0 0.0
        %765 = vmatpush.msra.mxu0 0.0
        %766 = vmatpush.msra.mxu0 0.0
        %767 = vmatpush.msra.mxu0 %v653
        %768 = vmatpush.msra.mxu0 %v652
        %769 = vmatpush.msra.mxu0 %v651
        %770 = vmatpush.msra.mxu0 %v650
        %771 = vmatmul.f32.gmra.mxu0 %v660
        %v772 = vpop.f32.mrf.mxu0
        %v773 = vadd.f32 %v656, %v772
        %774 = vmatmul.f32.gmra.mxu0 %v663
        %v775 = vpop.f32.mrf.mxu0
        %v776 = vadd.f32 %v656, %v775
        %777 = vmatmul.f32.gmra.mxu0 %v666
        %v778 = vpop.f32.mrf.mxu0
        %v779 = vadd.f32 %v656, %v778
        %780 = vmatmul.f32.gmra.mxu0 %v669
        %v781 = vpop.f32.mrf.mxu0
        %v782 = vadd.f32 %v656, %v781
        %783 = vmatmul.f32.gmra.mxu0 %v672
        %v784 = vpop.f32.mrf.mxu0
        %v785 = vadd.f32 %v656, %v784
        %786 = vmatmul.f32.gmra.mxu0 %v675
        %v787 = vpop.f32.mrf.mxu0
        %v788 = vadd.f32 %v656, %v787
        %789 = vmatmul.f32.gmra.mxu0 %v678
        %v790 = vpop.f32.mrf.mxu0
        %v791 = vadd.f32 %v656, %v790
        %792 = vmatmul.f32.gmra.mxu0 %v681
        %v793 = vpop.f32.mrf.mxu0
        %v794 = vadd.f32 %v656, %v793
        %795 = vmatmul.f32.gmra.mxu0 %v684
        %v796 = vpop.f32.mrf.mxu0
        %v797 = vadd.f32 %v656, %v796
        %798 = vmatmul.f32.gmra.mxu0 %v687
        %v799 = vpop.f32.mrf.mxu0
        %v800 = vadd.f32 %v656, %v799
        %801 = vmatmul.f32.gmra.mxu0 %v690
        %v802 = vpop.f32.mrf.mxu0
        %v803 = vadd.f32 %v656, %v802
        %804 = vmatmul.f32.gmra.mxu0 %v693
        %v805 = vpop.f32.mrf.mxu0
        %v806 = vadd.f32 %v656, %v805
        %807 = vmatmul.f32.gmra.mxu0 %v696
        %v808 = vpop.f32.mrf.mxu0
        %v809 = vadd.f32 %v656, %v808
        %810 = vmatmul.f32.gmra.mxu0 %v699
        %v811 = vpop.f32.mrf.mxu0
        %v812 = vadd.f32 %v656, %v811
        %813 = vmatmul.f32.gmra.mxu0 %v702
        %v814 = vpop.f32.mrf.mxu0
        %v815 = vadd.f32 %v656, %v814
        %816 = vmatmul.f32.gmra.mxu0 %v705
        %v817 = vpop.f32.mrf.mxu0
        %v818 = vadd.f32 %v656, %v817
        %819 = vmatmul.f32.gmra.mxu0 %v708
        %v820 = vpop.f32.mrf.mxu0
        %v821 = vadd.f32 %v656, %v820
        %822 = vmatmul.f32.gmra.mxu0 %v711
        %v823 = vpop.f32.mrf.mxu0
        %v824 = vadd.f32 %v656, %v823
        %825 = vmatmul.f32.gmra.mxu0 %v714
        %v826 = vpop.f32.mrf.mxu0
        %v827 = vadd.f32 %v656, %v826
        %828 = vmatmul.f32.gmra.mxu0 %v717
        %v829 = vpop.f32.mrf.mxu0
        %v830 = vadd.f32 %v656, %v829
        %831 = vmatmul.f32.gmra.mxu0 %v720
        %v832 = vpop.f32.mrf.mxu0
        %v833 = vadd.f32 %v656, %v832
        %834 = vmatmul.f32.gmra.mxu0 %v723
        %v835 = vpop.f32.mrf.mxu0
        %v836 = vadd.f32 %v656, %v835
        %837 = vmatmul.f32.gmra.mxu0 %v726
        %v838 = vpop.f32.mrf.mxu0
        %v839 = vadd.f32 %v656, %v838
        %840 = vmatmul.f32.gmra.mxu0 %v729
        %v841 = vpop.f32.mrf.mxu0
        %v842 = vadd.f32 %v656, %v841
        %843 = vmatmul.f32.gmra.mxu0 %v732
        %v844 = vpop.f32.mrf.mxu0
        %v845 = vadd.f32 %v656, %v844
        %846 = vmatmul.f32.gmra.mxu0 %v735
        %v847 = vpop.f32.mrf.mxu0
        %v848 = vadd.f32 %v656, %v847
        %849 = vmatmul.f32.gmra.mxu0 %v738
        %v850 = vpop.f32.mrf.mxu0
        %v851 = vadd.f32 %v656, %v850
        %852 = vmatmul.f32.gmra.mxu0 %v741
        %v853 = vpop.f32.mrf.mxu0
        %v854 = vadd.f32 %v656, %v853
        %855 = vmatmul.f32.gmra.mxu0 %v744
        %v856 = vpop.f32.mrf.mxu0
        %v857 = vadd.f32 %v656, %v856
        %858 = vmatmul.f32.gmra.mxu0 %v747
        %v859 = vpop.f32.mrf.mxu0
        %v860 = vadd.f32 %v656, %v859
        %861 = vmatmul.f32.gmra.mxu0 %v750
        %v862 = vpop.f32.mrf.mxu0
        %v863 = vadd.f32 %v656, %v862
        %864 = vmatmul.f32.gmra.mxu0 %v753
        %v865 = vpop.f32.mrf.mxu0
        %v866 = vadd.f32 %v656, %v865
        %867 = vdwg.mxu0
        %vm868 = vcmask 523264
        %v870 = vsel %vm868, %v586, 0
        %v873 = vsel %vm868, %v587, 0
        %v876 = vsel %vm868, %v588, 0
        %v879 = vsel %vm868, %v589, 0
        %v882 = vsel %vm868, %v590, 0
        %v885 = vsel %vm868, %v591, 0
        %v888 = vsel %vm868, %v592, 0
        %v891 = vsel %vm868, %v593, 0
        %893 = vmatpush.msra.mxu0 0.0
        %894 = vmatpush.msra.mxu0 0.0
        %895 = vmatpush.msra.mxu0 0.0
        %896 = vmatpush.msra.mxu0 0.0
        %897 = vmatpush.msra.mxu0 0.0
        %898 = vmatpush.msra.mxu0 0.0
        %899 = vmatpush.msra.mxu0 0.0
        %900 = vmatpush.msra.mxu0 0.0
        %901 = vmatpush.msra.mxu0 %v794
        %902 = vmatpush.msra.mxu0 %v791
        %903 = vmatpush.msra.mxu0 %v788
        %904 = vmatpush.msra.mxu0 %v785
        %905 = vmatpush.msra.mxu0 %v782
        %906 = vmatpush.msra.mxu0 %v779
        %907 = vmatpush.msra.mxu0 %v776
        %908 = vmatpush.msra.mxu0 %v773
        %909 = vmatmul.f32.gmra.mxu0 %v870
        %v910 = vpop.f32.mrf.mxu0
        %v911 = vadd.f32 0.0, %v910
        %912 = vmatmul.f32.gmra.mxu0 %v873
        %v913 = vpop.f32.mrf.mxu0
        %v914 = vadd.f32 0.0, %v913
        %915 = vmatmul.f32.gmra.mxu0 %v876
        %v916 = vpop.f32.mrf.mxu0
        %v917 = vadd.f32 0.0, %v916
        %918 = vmatmul.f32.gmra.mxu0 %v879
        %v919 = vpop.f32.mrf.mxu0
        %v920 = vadd.f32 0.0, %v919
        %921 = vmatmul.f32.gmra.mxu0 %v882
        %v922 = vpop.f32.mrf.mxu0
        %v923 = vadd.f32 0.0, %v922
        %924 = vmatmul.f32.gmra.mxu0 %v885
        %v925 = vpop.f32.mrf.mxu0
        %v926 = vadd.f32 0.0, %v925
        %927 = vmatmul.f32.gmra.mxu0 %v888
        %v928 = vpop.f32.mrf.mxu0
        %v929 = vadd.f32 0.0, %v928
        %930 = vmatmul.f32.gmra.mxu0 %v891
        %v931 = vpop.f32.mrf.mxu0
        %v932 = vadd.f32 0.0, %v931
        %933 = vdwg.mxu0
        %v935 = vsel %vm868, %v594, 0
        %v938 = vsel %vm868, %v595, 0
        %v941 = vsel %vm868, %v596, 0
        %v944 = vsel %vm868, %v597, 0
        %v947 = vsel %vm868, %v598, 0
        %v950 = vsel %vm868, %v599, 0
        %v953 = vsel %vm868, %v600, 0
        %v956 = vsel %vm868, %v601, 0
        %958 = vmatpush.msra.mxu0 0.0
        %959 = vmatpush.msra.mxu0 0.0
        %960 = vmatpush.msra.mxu0 0.0
        %961 = vmatpush.msra.mxu0 0.0
        %962 = vmatpush.msra.mxu0 0.0
        %963 = vmatpush.msra.mxu0 0.0
        %964 = vmatpush.msra.mxu0 0.0
        %965 = vmatpush.msra.mxu0 0.0
        %966 = vmatpush.msra.mxu0 %v818
        %967 = vmatpush.msra.mxu0 %v815
        %968 = vmatpush.msra.mxu0 %v812
        %969 = vmatpush.msra.mxu0 %v809
        %970 = vmatpush.msra.mxu0 %v806
        %971 = vmatpush.msra.mxu0 %v803
        %972 = vmatpush.msra.mxu0 %v800
        %973 = vmatpush.msra.mxu0 %v797
        %974 = vmatmul.f32.gmra.mxu0 %v935
        %v975 = vpop.f32.mrf.mxu0
        %v976 = vadd.f32 0.0, %v975
        %977 = vmatmul.f32.gmra.mxu0 %v938
        %v978 = vpop.f32.mrf.mxu0
        %v979 = vadd.f32 0.0, %v978
        %980 = vmatmul.f32.gmra.mxu0 %v941
        %v981 = vpop.f32.mrf.mxu0
        %v982 = vadd.f32 0.0, %v981
        %983 = vmatmul.f32.gmra.mxu0 %v944
        %v984 = vpop.f32.mrf.mxu0
        %v985 = vadd.f32 0.0, %v984
        %986 = vmatmul.f32.gmra.mxu0 %v947
        %v987 = vpop.f32.mrf.mxu0
        %v988 = vadd.f32 0.0, %v987
        %989 = vmatmul.f32.gmra.mxu0 %v950
        %v990 = vpop.f32.mrf.mxu0
        %v991 = vadd.f32 0.0, %v990
        %992 = vmatmul.f32.gmra.mxu0 %v953
        %v993 = vpop.f32.mrf.mxu0
        %v994 = vadd.f32 0.0, %v993
        %995 = vmatmul.f32.gmra.mxu0 %v956
        %v996 = vpop.f32.mrf.mxu0
        %v997 = vadd.f32 0.0, %v996
        %998 = vdwg.mxu0
        %v1000 = vsel %vm868, %v602, 0
        %v1003 = vsel %vm868, %v603, 0
        %v1006 = vsel %vm868, %v604, 0
        %v1009 = vsel %vm868, %v605, 0
        %v1012 = vsel %vm868, %v606, 0
        %v1015 = vsel %vm868, %v607, 0
        %v1018 = vsel %vm868, %v608, 0
        %v1021 = vsel %vm868, %v609, 0
        %1023 = vmatpush.msra.mxu0 0.0
        %1024 = vmatpush.msra.mxu0 0.0
        %1025 = vmatpush.msra.mxu0 0.0
        %1026 = vmatpush.msra.mxu0 0.0
        %1027 = vmatpush.msra.mxu0 0.0
        %1028 = vmatpush.msra.mxu0 0.0
        %1029 = vmatpush.msra.mxu0 0.0
        %1030 = vmatpush.msra.mxu0 0.0
        %1031 = vmatpush.msra.mxu0 %v842
        %1032 = vmatpush.msra.mxu0 %v839
        %1033 = vmatpush.msra.mxu0 %v836
        %1034 = vmatpush.msra.mxu0 %v833
        %1035 = vmatpush.msra.mxu0 %v830
        %1036 = vmatpush.msra.mxu0 %v827
        %1037 = vmatpush.msra.mxu0 %v824
        %1038 = vmatpush.msra.mxu0 %v821
        %1039 = vmatmul.f32.gmra.mxu0 %v1000
        %v1040 = vpop.f32.mrf.mxu0
        %v1041 = vadd.f32 0.0, %v1040
        %1042 = vmatmul.f32.gmra.mxu0 %v1003
        %v1043 = vpop.f32.mrf.mxu0
        %v1044 = vadd.f32 0.0, %v1043
        %1045 = vmatmul.f32.gmra.mxu0 %v1006
        %v1046 = vpop.f32.mrf.mxu0
        %v1047 = vadd.f32 0.0, %v1046
        %1048 = vmatmul.f32.gmra.mxu0 %v1009
        %v1049 = vpop.f32.mrf.mxu0
        %v1050 = vadd.f32 0.0, %v1049
        %1051 = vmatmul.f32.gmra.mxu0 %v1012
        %v1052 = vpop.f32.mrf.mxu0
        %v1053 = vadd.f32 0.0, %v1052
        %1054 = vmatmul.f32.gmra.mxu0 %v1015
        %v1055 = vpop.f32.mrf.mxu0
        %v1056 = vadd.f32 0.0, %v1055
        %1057 = vmatmul.f32.gmra.mxu0 %v1018
        %v1058 = vpop.f32.mrf.mxu0
        %v1059 = vadd.f32 0.0, %v1058
        %1060 = vmatmul.f32.gmra.mxu0 %v1021
        %v1061 = vpop.f32.mrf.mxu0
        %v1062 = vadd.f32 0.0, %v1061
        %1063 = vdwg.mxu0
        %v1065 = vsel %vm868, %v610, 0
        %v1068 = vsel %vm868, %v611, 0
        %v1071 = vsel %vm868, %v612, 0
        %v1074 = vsel %vm868, %v613, 0
        %v1077 = vsel %vm868, %v614, 0
        %v1080 = vsel %vm868, %v615, 0
        %v1083 = vsel %vm868, %v616, 0
        %v1086 = vsel %vm868, %v617, 0
        %1088 = vmatpush.msra.mxu0 0.0
        %1089 = vmatpush.msra.mxu0 0.0
        %1090 = vmatpush.msra.mxu0 0.0
        %1091 = vmatpush.msra.mxu0 0.0
        %1092 = vmatpush.msra.mxu0 0.0
        %1093 = vmatpush.msra.mxu0 0.0
        %1094 = vmatpush.msra.mxu0 0.0
        %1095 = vmatpush.msra.mxu0 0.0
        %1096 = vmatpush.msra.mxu0 %v866
        %1097 = vmatpush.msra.mxu0 %v863
        %1098 = vmatpush.msra.mxu0 %v860
        %1099 = vmatpush.msra.mxu0 %v857
        %1100 = vmatpush.msra.mxu0 %v854
        %1101 = vmatpush.msra.mxu0 %v851
        %1102 = vmatpush.msra.mxu0 %v848
        %1103 = vmatpush.msra.mxu0 %v845
        %1104 = vmatmul.f32.gmra.mxu0 %v1065
        %v1105 = vpop.f32.mrf.mxu0
        %v1106 = vadd.f32 0.0, %v1105
        %1107 = vmatmul.f32.gmra.mxu0 %v1068
        %v1108 = vpop.f32.mrf.mxu0
        %v1109 = vadd.f32 0.0, %v1108
        %1110 = vmatmul.f32.gmra.mxu0 %v1071
        %v1111 = vpop.f32.mrf.mxu0
        %v1112 = vadd.f32 0.0, %v1111
        %1113 = vmatmul.f32.gmra.mxu0 %v1074
        %v1114 = vpop.f32.mrf.mxu0
        %v1115 = vadd.f32 0.0, %v1114
        %1116 = vmatmul.f32.gmra.mxu0 %v1077
        %v1117 = vpop.f32.mrf.mxu0
        %v1118 = vadd.f32 0.0, %v1117
        %1119 = vmatmul.f32.gmra.mxu0 %v1080
        %v1120 = vpop.f32.mrf.mxu0
        %v1121 = vadd.f32 0.0, %v1120
        %1122 = vmatmul.f32.gmra.mxu0 %v1083
        %v1123 = vpop.f32.mrf.mxu0
        %v1124 = vadd.f32 0.0, %v1123
        %1125 = vmatmul.f32.gmra.mxu0 %v1086
        %v1126 = vpop.f32.mrf.mxu0
        %v1127 = vadd.f32 0.0, %v1126
        %1128 = vdwg.mxu0
        %v1129 = vmax.f32 %v911, 0.0
        %v1130 = vmax.f32 %v914, 0.0
        %v1131 = vmax.f32 %v917, 0.0
        %v1132 = vmax.f32 %v920, 0.0
        %v1133 = vmax.f32 %v923, 0.0
        %v1134 = vmax.f32 %v926, 0.0
        %v1135 = vmax.f32 %v929, 0.0
        %v1136 = vmax.f32 %v932, 0.0
        %v1137 = vmax.f32 %v976, 0.0
        %v1138 = vmax.f32 %v979, 0.0
        %v1139 = vmax.f32 %v982, 0.0
        %v1140 = vmax.f32 %v985, 0.0
        %v1141 = vmax.f32 %v988, 0.0
        %v1142 = vmax.f32 %v991, 0.0
        %v1143 = vmax.f32 %v994, 0.0
        %v1144 = vmax.f32 %v997, 0.0
        %v1145 = vmax.f32 %v1041, 0.0
        %v1146 = vmax.f32 %v1044, 0.0
        %v1147 = vmax.f32 %v1047, 0.0
        %v1148 = vmax.f32 %v1050, 0.0
        %v1149 = vmax.f32 %v1053, 0.0
        %v1150 = vmax.f32 %v1056, 0.0
        %v1151 = vmax.f32 %v1059, 0.0
        %v1152 = vmax.f32 %v1062, 0.0
        %v1153 = vmax.f32 %v1106, 0.0
        %v1154 = vmax.f32 %v1109, 0.0
        %v1155 = vmax.f32 %v1112, 0.0
        %v1156 = vmax.f32 %v1115, 0.0
        %v1157 = vmax.f32 %v1118, 0.0
        %v1158 = vmax.f32 %v1121, 0.0
        %v1159 = vmax.f32 %v1124, 0.0
        %v1160 = vmax.f32 %v1127, 0.0
        %v1161 = vld [vmem:[%s5] sm:$0xff]
        %v1162 = vld [vmem:[%s5 + $0x8] sm:$0xff]
        %v1163 = vld [vmem:[%s5 + $0x10] sm:$0xff]
        %v1164 = vld [vmem:[%s5 + $0x18] sm:$0xff]
        %v1165 = vld [vmem:[%s5 + $0x20] sm:$0xff]
        %v1166 = vld [vmem:[%s5 + $0x28] sm:$0xff]
        %v1167 = vld [vmem:[%s5 + $0x30] sm:$0xff]
        %v1168 = vld [vmem:[%s5 + $0x38] sm:$0xff]
        %v1169 = vld [vmem:[%s5 + $0x40] sm:$0xff]
        %v1170 = vld [vmem:[%s5 + $0x48] sm:$0xff]
        %v1171 = vld [vmem:[%s5 + $0x50] sm:$0xff]
        %v1172 = vld [vmem:[%s5 + $0x58] sm:$0xff]
        %v1173 = vld [vmem:[%s5 + $0x60] sm:$0xff]
        %v1174 = vld [vmem:[%s5 + $0x68] sm:$0xff]
        %v1175 = vld [vmem:[%s5 + $0x70] sm:$0xff]
        %v1176 = vld [vmem:[%s5 + $0x78] sm:$0xff]
        %v1177 = vld [vmem:[%s6] sm:$0x1]
        %v1179 = vperm.slane %v1177, 0
        %1181 = vmatpush.msra.mxu0 %v1176
        %1182 = vmatpush.msra.mxu0 %v1175
        %1183 = vmatpush.msra.mxu0 %v1174
        %1184 = vmatpush.msra.mxu0 %v1173
        %1185 = vmatpush.msra.mxu0 %v1172
        %1186 = vmatpush.msra.mxu0 %v1171
        %1187 = vmatpush.msra.mxu0 %v1170
        %1188 = vmatpush.msra.mxu0 %v1169
        %1189 = vmatpush.msra.mxu0 %v1168
        %1190 = vmatpush.msra.mxu0 %v1167
        %1191 = vmatpush.msra.mxu0 %v1166
        %1192 = vmatpush.msra.mxu0 %v1165
        %1193 = vmatpush.msra.mxu0 %v1164
        %1194 = vmatpush.msra.mxu0 %v1163
        %1195 = vmatpush.msra.mxu0 %v1162
        %1196 = vmatpush.msra.mxu0 %v1161
        %1197 = vmatmul.f32.gmra.mxu0 %v1129
        %v1198 = vpop.f32.mrf.mxu0
        %v1199 = vadd.f32 %v1179, %v1198
        %1200 = vmatmul.f32.gmra.mxu0 %v1130
        %v1201 = vpop.f32.mrf.mxu0
        %v1202 = vadd.f32 %v1179, %v1201
        %1203 = vmatmul.f32.gmra.mxu0 %v1131
        %v1204 = vpop.f32.mrf.mxu0
        %v1205 = vadd.f32 %v1179, %v1204
        %1206 = vmatmul.f32.gmra.mxu0 %v1132
        %v1207 = vpop.f32.mrf.mxu0
        %v1208 = vadd.f32 %v1179, %v1207
        %1209 = vmatmul.f32.gmra.mxu0 %v1133
        %v1210 = vpop.f32.mrf.mxu0
        %v1211 = vadd.f32 %v1179, %v1210
        %1212 = vmatmul.f32.gmra.mxu0 %v1134
        %v1213 = vpop.f32.mrf.mxu0
        %v1214 = vadd.f32 %v1179, %v1213
        %1215 = vmatmul.f32.gmra.mxu0 %v1135
        %v1216 = vpop.f32.mrf.mxu0
        %v1217 = vadd.f32 %v1179, %v1216
        %1218 = vmatmul.f32.gmra.mxu0 %v1136
        %v1219 = vpop.f32.mrf.mxu0
        %v1220 = vadd.f32 %v1179, %v1219
        %1221 = vmatmul.f32.gmra.mxu0 %v1137
        %v1222 = vpop.f32.mrf.mxu0
        %v1223 = vadd.f32 %v1179, %v1222
        %1224 = vmatmul.f32.gmra.mxu0 %v1138
        %v1225 = vpop.f32.mrf.mxu0
        %v1226 = vadd.f32 %v1179, %v1225
        %1227 = vmatmul.f32.gmra.mxu0 %v1139
        %v1228 = vpop.f32.mrf.mxu0
        %v1229 = vadd.f32 %v1179, %v1228
        %1230 = vmatmul.f32.gmra.mxu0 %v1140
        %v1231 = vpop.f32.mrf.mxu0
        %v1232 = vadd.f32 %v1179, %v1231
        %1233 = vmatmul.f32.gmra.mxu0 %v1141
        %v1234 = vpop.f32.mrf.mxu0
        %v1235 = vadd.f32 %v1179, %v1234
        %1236 = vmatmul.f32.gmra.mxu0 %v1142
        %v1237 = vpop.f32.mrf.mxu0
        %v1238 = vadd.f32 %v1179, %v1237
        %1239 = vmatmul.f32.gmra.mxu0 %v1143
        %v1240 = vpop.f32.mrf.mxu0
        %v1241 = vadd.f32 %v1179, %v1240
        %1242 = vmatmul.f32.gmra.mxu0 %v1144
        %v1243 = vpop.f32.mrf.mxu0
        %v1244 = vadd.f32 %v1179, %v1243
        %1245 = vmatmul.f32.gmra.mxu0 %v1145
        %v1246 = vpop.f32.mrf.mxu0
        %v1247 = vadd.f32 %v1179, %v1246
        %1248 = vmatmul.f32.gmra.mxu0 %v1146
        %v1249 = vpop.f32.mrf.mxu0
        %v1250 = vadd.f32 %v1179, %v1249
        %1251 = vmatmul.f32.gmra.mxu0 %v1147
        %v1252 = vpop.f32.mrf.mxu0
        %v1253 = vadd.f32 %v1179, %v1252
        %1254 = vmatmul.f32.gmra.mxu0 %v1148
        %v1255 = vpop.f32.mrf.mxu0
        %v1256 = vadd.f32 %v1179, %v1255
        %1257 = vmatmul.f32.gmra.mxu0 %v1149
        %v1258 = vpop.f32.mrf.mxu0
        %v1259 = vadd.f32 %v1179, %v1258
        %1260 = vmatmul.f32.gmra.mxu0 %v1150
        %v1261 = vpop.f32.mrf.mxu0
        %v1262 = vadd.f32 %v1179, %v1261
        %1263 = vmatmul.f32.gmra.mxu0 %v1151
        %v1264 = vpop.f32.mrf.mxu0
        %v1265 = vadd.f32 %v1179, %v1264
        %1266 = vmatmul.f32.gmra.mxu0 %v1152
        %v1267 = vpop.f32.mrf.mxu0
        %v1268 = vadd.f32 %v1179, %v1267
        %1269 = vmatmul.f32.gmra.mxu0 %v1153
        %v1270 = vpop.f32.mrf.mxu0
        %v1271 = vadd.f32 %v1179, %v1270
        %1272 = vmatmul.f32.gmra.mxu0 %v1154
        %v1273 = vpop.f32.mrf.mxu0
        %v1274 = vadd.f32 %v1179, %v1273
        %1275 = vmatmul.f32.gmra.mxu0 %v1155
        %v1276 = vpop.f32.mrf.mxu0
        %v1277 = vadd.f32 %v1179, %v1276
        %1278 = vmatmul.f32.gmra.mxu0 %v1156
        %v1279 = vpop.f32.mrf.mxu0
        %v1280 = vadd.f32 %v1179, %v1279
        %1281 = vmatmul.f32.gmra.mxu0 %v1157
        %v1282 = vpop.f32.mrf.mxu0
        %v1283 = vadd.f32 %v1179, %v1282
        %1284 = vmatmul.f32.gmra.mxu0 %v1158
        %v1285 = vpop.f32.mrf.mxu0
        %v1286 = vadd.f32 %v1179, %v1285
        %1287 = vmatmul.f32.gmra.mxu0 %v1159
        %v1288 = vpop.f32.mrf.mxu0
        %v1289 = vadd.f32 %v1179, %v1288
        %1290 = vmatmul.f32.gmra.mxu0 %v1160
        %v1291 = vpop.f32.mrf.mxu0
        %v1292 = vadd.f32 %v1179, %v1291
        %1293 = vdwg.mxu0
        %1294 = vmatpush.msra.mxu0 0.0
        %1295 = vmatpush.msra.mxu0 0.0
        %1296 = vmatpush.msra.mxu0 0.0
        %1297 = vmatpush.msra.mxu0 0.0
        %1298 = vmatpush.msra.mxu0 0.0
        %1299 = vmatpush.msra.mxu0 0.0
        %1300 = vmatpush.msra.mxu0 0.0
        %1301 = vmatpush.msra.mxu0 0.0
        %1302 = vmatpush.msra.mxu0 %v1220
        %1303 = vmatpush.msra.mxu0 %v1217
        %1304 = vmatpush.msra.mxu0 %v1214
        %1305 = vmatpush.msra.mxu0 %v1211
        %1306 = vmatpush.msra.mxu0 %v1208
        %1307 = vmatpush.msra.mxu0 %v1205
        %1308 = vmatpush.msra.mxu0 %v1202
        %1309 = vmatpush.msra.mxu0 %v1199
        %1310 = vmatmul.f32.gmra.mxu0 %v870
        %v1311 = vpop.f32.mrf.mxu0
        %v1312 = vadd.f32 0.0, %v1311
        %1313 = vmatmul.f32.gmra.mxu0 %v873
        %v1314 = vpop.f32.mrf.mxu0
        %v1315 = vadd.f32 0.0, %v1314
        %1316 = vmatmul.f32.gmra.mxu0 %v876
        %v1317 = vpop.f32.mrf.mxu0
        %v1318 = vadd.f32 0.0, %v1317
        %1319 = vmatmul.f32.gmra.mxu0 %v879
        %v1320 = vpop.f32.mrf.mxu0
        %v1321 = vadd.f32 0.0, %v1320
        %1322 = vmatmul.f32.gmra.mxu0 %v882
        %v1323 = vpop.f32.mrf.mxu0
        %v1324 = vadd.f32 0.0, %v1323
        %1325 = vmatmul.f32.gmra.mxu0 %v885
        %v1326 = vpop.f32.mrf.mxu0
        %v1327 = vadd.f32 0.0, %v1326
        %1328 = vmatmul.f32.gmra.mxu0 %v888
        %v1329 = vpop.f32.mrf.mxu0
        %v1330 = vadd.f32 0.0, %v1329
        %1331 = vmatmul.f32.gmra.mxu0 %v891
        %v1332 = vpop.f32.mrf.mxu0
        %v1333 = vadd.f32 0.0, %v1332
        %1334 = vdwg.mxu0
        %1335 = vmatpush.msra.mxu0 0.0
        %1336 = vmatpush.msra.mxu0 0.0
        %1337 = vmatpush.msra.mxu0 0.0
        %1338 = vmatpush.msra.mxu0 0.0
        %1339 = vmatpush.msra.mxu0 0.0
        %1340 = vmatpush.msra.mxu0 0.0
        %1341 = vmatpush.msra.mxu0 0.0
        %1342 = vmatpush.msra.mxu0 0.0
        %1343 = vmatpush.msra.mxu0 %v1244
        %1344 = vmatpush.msra.mxu0 %v1241
        %1345 = vmatpush.msra.mxu0 %v1238
        %1346 = vmatpush.msra.mxu0 %v1235
        %1347 = vmatpush.msra.mxu0 %v1232
        %1348 = vmatpush.msra.mxu0 %v1229
        %1349 = vmatpush.msra.mxu0 %v1226
        %1350 = vmatpush.msra.mxu0 %v1223
        %1351 = vmatmul.f32.gmra.mxu0 %v935
        %v1352 = vpop.f32.mrf.mxu0
        %v1353 = vadd.f32 0.0, %v1352
        %1354 = vmatmul.f32.gmra.mxu0 %v938
        %v1355 = vpop.f32.mrf.mxu0
        %v1356 = vadd.f32 0.0, %v1355
        %1357 = vmatmul.f32.gmra.mxu0 %v941
        %v1358 = vpop.f32.mrf.mxu0
        %v1359 = vadd.f32 0.0, %v1358
        %1360 = vmatmul.f32.gmra.mxu0 %v944
        %v1361 = vpop.f32.mrf.mxu0
        %v1362 = vadd.f32 0.0, %v1361
        %1363 = vmatmul.f32.gmra.mxu0 %v947
        %v1364 = vpop.f32.mrf.mxu0
        %v1365 = vadd.f32 0.0, %v1364
        %1366 = vmatmul.f32.gmra.mxu0 %v950
        %v1367 = vpop.f32.mrf.mxu0
        %v1368 = vadd.f32 0.0, %v1367
        %1369 = vmatmul.f32.gmra.mxu0 %v953
        %v1370 = vpop.f32.mrf.mxu0
        %v1371 = vadd.f32 0.0, %v1370
        %1372 = vmatmul.f32.gmra.mxu0 %v956
        %v1373 = vpop.f32.mrf.mxu0
        %v1374 = vadd.f32 0.0, %v1373
        %1375 = vdwg.mxu0
        %1376 = vmatpush.msra.mxu0 0.0
        %1377 = vmatpush.msra.mxu0 0.0
        %1378 = vmatpush.msra.mxu0 0.0
        %1379 = vmatpush.msra.mxu0 0.0
        %1380 = vmatpush.msra.mxu0 0.0
        %1381 = vmatpush.msra.mxu0 0.0
        %1382 = vmatpush.msra.mxu0 0.0
        %1383 = vmatpush.msra.mxu0 0.0
        %1384 = vmatpush.msra.mxu0 %v1268
        %1385 = vmatpush.msra.mxu0 %v1265
        %1386 = vmatpush.msra.mxu0 %v1262
        %1387 = vmatpush.msra.mxu0 %v1259
        %1388 = vmatpush.msra.mxu0 %v1256
        %1389 = vmatpush.msra.mxu0 %v1253
        %1390 = vmatpush.msra.mxu0 %v1250
        %1391 = vmatpush.msra.mxu0 %v1247
        %1392 = vmatmul.f32.gmra.mxu0 %v1000
        %v1393 = vpop.f32.mrf.mxu0
        %v1394 = vadd.f32 0.0, %v1393
        %1395 = vmatmul.f32.gmra.mxu0 %v1003
        %v1396 = vpop.f32.mrf.mxu0
        %v1397 = vadd.f32 0.0, %v1396
        %1398 = vmatmul.f32.gmra.mxu0 %v1006
        %v1399 = vpop.f32.mrf.mxu0
        %v1400 = vadd.f32 0.0, %v1399
        %1401 = vmatmul.f32.gmra.mxu0 %v1009
        %v1402 = vpop.f32.mrf.mxu0
        %v1403 = vadd.f32 0.0, %v1402
        %1404 = vmatmul.f32.gmra.mxu0 %v1012
        %v1405 = vpop.f32.mrf.mxu0
        %v1406 = vadd.f32 0.0, %v1405
        %1407 = vmatmul.f32.gmra.mxu0 %v1015
        %v1408 = vpop.f32.mrf.mxu0
        %v1409 = vadd.f32 0.0, %v1408
        %1410 = vmatmul.f32.gmra.mxu0 %v1018
        %v1411 = vpop.f32.mrf.mxu0
        %v1412 = vadd.f32 0.0, %v1411
        %1413 = vmatmul.f32.gmra.mxu0 %v1021
        %v1414 = vpop.f32.mrf.mxu0
        %v1415 = vadd.f32 0.0, %v1414
        %1416 = vdwg.mxu0
        %1417 = vmatpush.msra.mxu0 0.0
        %1418 = vmatpush.msra.mxu0 0.0
        %1419 = vmatpush.msra.mxu0 0.0
        %1420 = vmatpush.msra.mxu0 0.0
        %1421 = vmatpush.msra.mxu0 0.0
        %1422 = vmatpush.msra.mxu0 0.0
        %1423 = vmatpush.msra.mxu0 0.0
        %1424 = vmatpush.msra.mxu0 0.0
        %1425 = vmatpush.msra.mxu0 %v1292
        %1426 = vmatpush.msra.mxu0 %v1289
        %1427 = vmatpush.msra.mxu0 %v1286
        %1428 = vmatpush.msra.mxu0 %v1283
        %1429 = vmatpush.msra.mxu0 %v1280
        %1430 = vmatpush.msra.mxu0 %v1277
        %1431 = vmatpush.msra.mxu0 %v1274
        %1432 = vmatpush.msra.mxu0 %v1271
        %1433 = vmatmul.f32.gmra.mxu0 %v1065
        %v1434 = vpop.f32.mrf.mxu0
        %v1435 = vadd.f32 0.0, %v1434
        %1436 = vmatmul.f32.gmra.mxu0 %v1068
        %v1437 = vpop.f32.mrf.mxu0
        %v1438 = vadd.f32 0.0, %v1437
        %1439 = vmatmul.f32.gmra.mxu0 %v1071
        %v1440 = vpop.f32.mrf.mxu0
        %v1441 = vadd.f32 0.0, %v1440
        %1442 = vmatmul.f32.gmra.mxu0 %v1074
        %v1443 = vpop.f32.mrf.mxu0
        %v1444 = vadd.f32 0.0, %v1443
        %1445 = vmatmul.f32.gmra.mxu0 %v1077
        %v1446 = vpop.f32.mrf.mxu0
        %v1447 = vadd.f32 0.0, %v1446
        %1448 = vmatmul.f32.gmra.mxu0 %v1080
        %v1449 = vpop.f32.mrf.mxu0
        %v1450 = vadd.f32 0.0, %v1449
        %1451 = vmatmul.f32.gmra.mxu0 %v1083
        %v1452 = vpop.f32.mrf.mxu0
        %v1453 = vadd.f32 0.0, %v1452
        %1454 = vmatmul.f32.gmra.mxu0 %v1086
        %v1455 = vpop.f32.mrf.mxu0
        %v1456 = vadd.f32 0.0, %v1455
        %1457 = vdwg.mxu0
        %1458 = vst [vmem:[%s308] sm:$0xff] %v1312
        %1459 = vst [vmem:[%s308 + $0x8] sm:$0xff] %v1315
        %1460 = vst [vmem:[%s308 + $0x10] sm:$0xff] %v1318
        %1461 = vst [vmem:[%s308 + $0x18] sm:$0xff] %v1321
        %1462 = vst [vmem:[%s308 + $0x20] sm:$0xff] %v1324
        %1463 = vst [vmem:[%s308 + $0x28] sm:$0xff] %v1327
        %1464 = vst [vmem:[%s308 + $0x30] sm:$0xff] %v1330
        %1465 = vst [vmem:[%s308 + $0x38] sm:$0xff] %v1333
        %1466 = vst [vmem:[%s308 + $0x40] sm:$0xff] %v1353
        %1467 = vst [vmem:[%s308 + $0x48] sm:$0xff] %v1356
        %1468 = vst [vmem:[%s308 + $0x50] sm:$0xff] %v1359
        %1469 = vst [vmem:[%s308 + $0x58] sm:$0xff] %v1362
        %1470 = vst [vmem:[%s308 + $0x60] sm:$0xff] %v1365
        %1471 = vst [vmem:[%s308 + $0x68] sm:$0xff] %v1368
        %1472 = vst [vmem:[%s308 + $0x70] sm:$0xff] %v1371
        %1473 = vst [vmem:[%s308 + $0x78] sm:$0xff] %v1374
        %1474 = vst [vmem:[%s308 + $0x80] sm:$0xff] %v1394
        %1475 = vst [vmem:[%s308 + $0x88] sm:$0xff] %v1397
        %1476 = vst [vmem:[%s308 + $0x90] sm:$0xff] %v1400
        %1477 = vst [vmem:[%s308 + $0x98] sm:$0xff] %v1403
        %1478 = vst [vmem:[%s308 + $0xa0] sm:$0xff] %v1406
        %1479 = vst [vmem:[%s308 + $0xa8] sm:$0xff] %v1409
        %1480 = vst [vmem:[%s308 + $0xb0] sm:$0xff] %v1412
        %1481 = vst [vmem:[%s308 + $0xb8] sm:$0xff] %v1415
        %1482 = vst [vmem:[%s308 + $0xc0] sm:$0xff] %v1435
        %1483 = vst [vmem:[%s308 + $0xc8] sm:$0xff] %v1438
        %1484 = vst [vmem:[%s308 + $0xd0] sm:$0xff] %v1441
        %1485 = vst [vmem:[%s308 + $0xd8] sm:$0xff] %v1444
        %1486 = vst [vmem:[%s308 + $0xe0] sm:$0xff] %v1447
        %1487 = vst [vmem:[%s308 + $0xe8] sm:$0xff] %v1450
        %1488 = vst [vmem:[%s308 + $0xf0] sm:$0xff] %v1453
        %1489 = vst [vmem:[%s308 + $0xf8] sm:$0xff] %v1456
        %s1490 = sand.u32 %s191, 1
        %s1491 = scalar_lea.sflag [#allocation3], %s1490
        %s1492 = sand.u32 %s191, 1
        %s1493 = smul.addr %s1492, 256
        %s1494 = scalar_lea.vmem [#allocation2], %s1493
        // Predicated region
        $region49: #{tpu_custom_call.1} parent=47 // pred_check
          %p1495 = pneg %p201
        $region50: #{tpu_custom_call.1} parent=47 // pred_check_branch
          %1497 = sbr.rel (%p1495) target = $region52
        $region51: #{tpu_custom_call.1} parent=47 // pred_region
          %s1498 = smul.u32 4, %s21
          %1500 = vsyncadd %s1491, 0
          %s1501 = smul.addr %s1498, 8
          %s1502 = smul.addr %s1501, 8
          %s1503 = scalar_lea.hbm %s7, %s1502
          %s1504 = sshll.u32 %s1494, 4
          %s1505 = int_to_ptr.vmem [resolvable:$true] %s1504
          %s1506 = sshll.u32 %s1503, 4
          %s1507 = int_to_ptr.hbm [resolvable:$true] %s1506
          %1512 = dma.vmem_to_hbm [thread:$0]  %s1505, 4096, %s1507, %s1491, 128, 128, 8
        $region52: #{tpu_custom_call.1} parent=47 // pred_fallthru
          _
      $region48: #{tpu_custom_call.1} parent=5 // pred_fallthru
        _
      %p1513 = scmp.le.s32.totalorder 2, %s16
      // Predicated region
      $region53: #{tpu_custom_call.1} parent=5 // pred_check
        %p1514 = pneg %p1513
      $region54: #{tpu_custom_call.1} parent=5 // pred_check_branch
        %1516 = sbr.rel (%p1514) target = $region56
      $region55: #{tpu_custom_call.1} parent=5 // pred_region
        %s1517 = ssub.s32 %s16, 2
        // Predicated region
        $region57: #{tpu_custom_call.1} parent=55 // pred_check
          %p1518 = pneg %p207
        $region58: #{tpu_custom_call.1} parent=55 // pred_check_branch
          %1520 = sbr.rel (%p1518) target = $region60
        $region59: #{tpu_custom_call.1} parent=55 // pred_region
          %s1521 = sand.u32 %s192, 1
          %s1522 = scalar_lea.sflag [#allocation3], %s1521
          %s1523 = sand.u32 %s192, 1
          %s1524 = smul.addr %s1523, 256
          %s1525 = scalar_lea.vmem [#allocation2], %s1524
          %1527 = dma.done %s1522, 4096
        $region60: #{tpu_custom_call.1} parent=55 // pred_fallthru
          _
      $region56: #{tpu_custom_call.1} parent=5 // pred_fallthru
        _
    $region6: #{tpu_custom_call.1} parent=1 // loop_footer
      %s20 = sadd.s32 1, %s16
    $region7: #{tpu_custom_call.1} parent=1 // loop_footer_branch
      %15 = sbr.rel target = $region3
    $region8: #{tpu_custom_call.1} parent=1 // loop_exit
      _
    %1528 = vsyncpa [#allocation3], 1
    %s1529 = scalar_lea.sflag [#allocation3], 1
    %1530 = vsyncpa %s1529, 1

</llo_original>
